<compile_context>
chip_gen: v6e
topology: v6e:2x2x1
jax: 0.10.0
libtpu: 0.0.40
codegen_flags: <defaults>
</compile_context>

<pallas_src>
import jax
import jax.numpy as jnp
from jax.experimental import pallas as pl
from jax.experimental.pallas import tpu as pltpu


# ---------------------------------------------------------------------------
# Kernels
# ---------------------------------------------------------------------------

def _lateral_kernel(x_ref, w_ref, s_ref, b_ref, o_ref):
    """1x1 conv (matmul) + folded BN affine + ReLU (coarsest level, no merge).

    x_ref: (1, tm, Cin_p)   w_ref: (Cin_p, Cp)   s_ref/b_ref: (1, Cp)
    o_ref: (1, tm, Cp)
    """
    lat = jnp.dot(x_ref[0], w_ref[...], preferred_element_type=jnp.float32)
    o_ref[0] = jnp.maximum(lat * s_ref[...] + b_ref[...], 0.0)


def _lateral_merge_kernel(x_ref, w_ref, s_ref, b_ref, up_ref, a_ref, o_ref):
    """Fused: lateral 1x1 conv + BN + ReLU, then += bilinear upsample of the
    coarser merged lateral (single dense matmul against the Kronecker
    interpolation matrix).

    x_ref:  (1, tm, Cin_p)
    w_ref:  (Cin_p, Cp)
    s_ref:  (1, Cp)      b_ref: (1, Cp)
    up_ref: (1, HiWi, Cp)   coarser merged lateral (flattened spatial)
    a_ref:  (tm, HiWi)      rows of kron(Mh, Mw) for this row tile
    o_ref:  (1, tm, Cp)
    """
    lat = jnp.dot(x_ref[0], w_ref[...], preferred_element_type=jnp.float32)
    lat = jnp.maximum(lat * s_ref[...] + b_ref[...], 0.0)
    up = jnp.dot(a_ref[...], up_ref[0], preferred_element_type=jnp.float32)
    o_ref[0] = lat + up


def _fpn3x3_kernel(xk_ref, w3_ref, s_ref, b_ref, o_ref):
    """3x3 conv (padding=1) + folded BN affine + ReLU as 3 lane-dense matmuls.

    xk_ref: (1, H+2, W, 3*Cp)  W-tap-packed, H-padded input (partial im2col)
    w3_ref: (3, 3*Cp, Cp)      weight with kw taps packed into the contraction
    s_ref:  (1, Cp)   b_ref: (1, Cp)
    o_ref:  (1, H*W, Cp)
    """
    _, hp2, w, c3 = xk_ref.shape
    h = hp2 - 2
    cp = o_ref.shape[-1]
    xfull = xk_ref[0]                               # (H+2, W, 3*Cp)
    acc = jnp.zeros((h * w, cp), jnp.float32)
    for kh in range(3):                             # row-shifted slices only
        xs = xfull[kh:kh + h].reshape(h * w, c3)
        acc = acc + jnp.dot(xs, w3_ref[kh], preferred_element_type=jnp.float32)
    y = acc * s_ref[...] + b_ref[...]
    o_ref[0] = jnp.maximum(y, 0.0)


# ---------------------------------------------------------------------------
# Wrappers
# ---------------------------------------------------------------------------

_VMEM_LIMIT = 32 * 1024 * 1024


def _round_up(n, m):
    return ((n + m - 1) // m) * m


def _pad_axis(a, size, axis):
    pad = size - a.shape[axis]
    if pad <= 0:
        return a
    cfg = [(0, 0)] * a.ndim
    cfg[axis] = (0, pad)
    return jnp.pad(a, cfg)


def _pick_row_tile(hw):
    for cand in (1024, 512, 256, 128, 64, 32, 16, 8):
        if hw % cand == 0:
            return cand
    return hw


def _interp_matrix(out_size, in_size):
    """Bilinear interpolation matrix, align_corners=True (PyTorch semantics)."""
    if out_size == 1:
        src = jnp.zeros((1,), jnp.float32)
    else:
        src = jnp.arange(out_size, dtype=jnp.float32) * (
            (in_size - 1) / (out_size - 1))
    lo = jnp.clip(jnp.floor(src).astype(jnp.int32), 0, in_size - 1)
    hi = jnp.minimum(lo + 1, in_size - 1)
    frac = src - lo.astype(jnp.float32)
    m = jnp.zeros((out_size, in_size), jnp.float32)
    idx = jnp.arange(out_size)
    m = m.at[idx, lo].add(1.0 - frac)
    m = m.at[idx, hi].add(frac)
    return m


def lateral_merge(x_flat, lat_w, lat_s, lat_b, up_flat=None, interp=None):
    """Fused lateral 1x1 conv + BN + ReLU (+ upsample-add of coarser level)."""
    n_b, hw, cin_p = x_flat.shape
    cp = lat_w.shape[1]
    tm = _pick_row_tile(hw)
    grid = (n_b, hw // tm)
    out_shape = jax.ShapeDtypeStruct((n_b, hw, cp), jnp.float32)
    out_spec = pl.BlockSpec((1, tm, cp), lambda n, r: (n, r, 0))
    cparams = pltpu.CompilerParams(
        dimension_semantics=("parallel", "parallel"),
        vmem_limit_bytes=_VMEM_LIMIT)

    if up_flat is None:
        return pl.pallas_call(
            _lateral_kernel,
            out_shape=out_shape,
            grid=grid,
            in_specs=[
                pl.BlockSpec((1, tm, cin_p), lambda n, r: (n, r, 0)),
                pl.BlockSpec((cin_p, cp), lambda n, r: (0, 0)),
                pl.BlockSpec((1, cp), lambda n, r: (0, 0)),
                pl.BlockSpec((1, cp), lambda n, r: (0, 0)),
            ],
            out_specs=out_spec,
            compiler_params=cparams,
        )(x_flat, lat_w, lat_s, lat_b)

    hiwi = up_flat.shape[1]
    return pl.pallas_call(
        _lateral_merge_kernel,
        out_shape=out_shape,
        grid=grid,
        in_specs=[
            pl.BlockSpec((1, tm, cin_p), lambda n, r: (n, r, 0)),
            pl.BlockSpec((cin_p, cp), lambda n, r: (0, 0)),
            pl.BlockSpec((1, cp), lambda n, r: (0, 0)),
            pl.BlockSpec((1, cp), lambda n, r: (0, 0)),
            pl.BlockSpec((1, hiwi, cp), lambda n, r: (n, 0, 0)),
            pl.BlockSpec((tm, hiwi), lambda n, r: (r, 0)),
        ],
        out_specs=out_spec,
        compiler_params=cparams,
    )(x_flat, lat_w, lat_s, lat_b, up_flat, interp)


def fpn_conv_bn_relu(merged, h, w, w3, scale, bias):
    """3x3 conv + folded BN + ReLU on the merged lateral (N, H*W, Cp)."""
    n_b, hw, cp = merged.shape
    c3 = 3 * cp
    x = merged.reshape(n_b, h, w, cp)
    xpad = jnp.pad(x, ((0, 0), (1, 1), (1, 1), (0, 0)))
    # Partial im2col along W: channels become [tap w-1 | tap w | tap w+1].
    xk = jnp.concatenate([xpad[:, :, kw:kw + w, :] for kw in range(3)], axis=-1)
    return pl.pallas_call(
        _fpn3x3_kernel,
        out_shape=jax.ShapeDtypeStruct((n_b, hw, cp), jnp.float32),
        grid=(n_b,),
        in_specs=[
            pl.BlockSpec((1, h + 2, w, c3), lambda n: (n, 0, 0, 0)),
            pl.BlockSpec((3, c3, cp), lambda n: (0, 0, 0)),
            pl.BlockSpec((1, cp), lambda n: (0, 0)),
            pl.BlockSpec((1, cp), lambda n: (0, 0)),
        ],
        out_specs=pl.BlockSpec((1, hw, cp), lambda n: (n, 0, 0)),
        compiler_params=pltpu.CompilerParams(
            dimension_semantics=("parallel",),
            vmem_limit_bytes=_VMEM_LIMIT),
    )(xk, w3, scale, bias)


# ---------------------------------------------------------------------------
# FPN_Neck parameters & forward
# ---------------------------------------------------------------------------

def _fold_bn(conv_bias, gamma, beta, mean, var, eps=1e-5):
    rstd = 1.0 / jnp.sqrt(var + eps)
    scale = gamma * rstd
    bias = (conv_bias - mean) * scale + beta
    return scale[None, :], bias[None, :]


def init_fpn_neck_params(key, filters, dim):
    cp = max(128, _round_up(dim, 128))
    params = {"dim": dim, "cp": cp, "cin_p": [],
              "lat_w": [], "lat_scale": [], "lat_bias": [],
              "fpn_w3": [], "fpn_scale": [], "fpn_bias": []}
    for ci in filters:
        cin_p = max(128, _round_up(ci, 128))
        keys = jax.random.split(key, 11)
        key = keys[0]
        # lateral: 1x1 conv (ci -> dim) + BN (folded)
        lw = 0.1 * jax.random.normal(keys[1], (ci, dim), jnp.float32)
        lb = 0.1 * jax.random.normal(keys[2], (dim,), jnp.float32)
        lg = 1.0 + 0.1 * jax.random.normal(keys[3], (dim,), jnp.float32)
        lbeta = 0.1 * jax.random.normal(keys[4], (dim,), jnp.float32)
        lmean = 0.1 * jax.random.normal(keys[5], (dim,), jnp.float32)
        lvar = 1.0 + 0.1 * jnp.abs(jax.random.normal(keys[6], (dim,), jnp.float32))
        ls, lbb = _fold_bn(lb, lg, lbeta, lmean, lvar)
        params["cin_p"].append(cin_p)
        params["lat_w"].append(_pad_axis(_pad_axis(lw, cin_p, 0), cp, 1))
        params["lat_scale"].append(_pad_axis(ls, cp, 1))
        params["lat_bias"].append(_pad_axis(lbb, cp, 1))
        # fpn: 3x3 conv (dim -> dim) + BN (folded); weight layout (kh, kw, Ci, Co)
        fw = 0.1 * jax.random.normal(keys[7], (3, 3, dim, dim), jnp.float32)
        fb = 0.1 * jax.random.normal(keys[8], (dim,), jnp.float32)
        fg = 1.0 + 0.1 * jax.random.normal(keys[9], (dim,), jnp.float32)
        fbeta = 0.1 * jax.random.normal(keys[10], (dim,), jnp.float32)
        fmean = jnp.zeros((dim,), jnp.float32)
        fvar = jnp.ones((dim,), jnp.float32)
        fs, fbb = _fold_bn(fb, fg, fbeta, fmean, fvar)
        fwp = jnp.pad(fw, ((0, 0), (0, 0), (0, cp - dim), (0, cp - dim)))
        # pack the three kw taps contiguously along the contraction dim
        w3 = jnp.stack(
            [jnp.concatenate([fwp[kh, 0], fwp[kh, 1], fwp[kh, 2]], axis=0)
             for kh in range(3)], axis=0)            # (3, 3*cp, cp)
        params["fpn_w3"].append(w3)
        params["fpn_scale"].append(_pad_axis(fs, cp, 1))
        params["fpn_bias"].append(_pad_axis(fbb, cp, 1))
    return params


def fpn_neck_forward(xs_nchw, params):
    """xs_nchw: list of NCHW feature maps (finest level first)."""
    n_levels = len(xs_nchw)
    dim, cp = params["dim"], params["cp"]

    flats, shapes, batch = [], [], None
    for i, x in enumerate(xs_nchw):
        n_b, c, h, w = x.shape
        batch = n_b
        xh = jnp.transpose(x, (0, 2, 3, 1)).astype(jnp.float32)  # NHWC
        xh = _pad_axis(xh, params["cin_p"][i], 3)
        flats.append(xh.reshape(n_b, h * w, params["cin_p"][i]))
        shapes.append((h, w))

    # Top-down pathway, fused lateral + upsample-add, coarsest -> finest.
    merged = [None] * n_levels
    for i in range(n_levels - 1, -1, -1):
        if i == n_levels - 1:
            merged[i] = lateral_merge(
                flats[i], params["lat_w"][i],
                params["lat_scale"][i], params["lat_bias"][i])
        else:
            ho, wo = shapes[i]
            hi, wi = shapes[i + 1]
            interp = jnp.kron(_interp_matrix(ho, hi), _interp_matrix(wo, wi))
            merged[i] = lateral_merge(
                flats[i], params["lat_w"][i],
                params["lat_scale"][i], params["lat_bias"][i],
                up_flat=merged[i + 1], interp=interp)

    # 3x3 fpn conv + BN + ReLU per level; return NCHW like PyTorch.
    outs = []
    for i in range(n_levels):
        h, w = shapes[i]
        o = fpn_conv_bn_relu(merged[i], h, w, params["fpn_w3"][i],
                             params["fpn_scale"][i], params["fpn_bias"][i])
        o = o[:, :, :dim].reshape(batch, h, w, dim)
        outs.append(jnp.transpose(o, (0, 3, 1, 2)))
    return outs


# ---------------------------------------------------------------------------
# Main
# ---------------------------------------------------------------------------

if __name__ == "__main__":
    filters = [4, 8, 16]
    dim = 8
    N = 2
    spatial = [16, 8, 4]  # pyramid: finest level first

    key = jax.random.PRNGKey(0)
    key, pkey = jax.random.split(key)
    params = init_fpn_neck_params(pkey, filters, dim)

    xs = []
    for ci, s in zip(filters, spatial):
        key, xkey = jax.random.split(key)
        xs.append(jax.random.normal(xkey, (N, ci, s, s), jnp.float32))

    outs = fpn_neck_forward(xs, params)
    outs = [jax.block_until_ready(o) for o in outs]

    # sanity checks: shapes, dtype, finiteness, ReLU non-negativity
    for i, o in enumerate(outs):
        assert o.shape == (N, dim, spatial[i], spatial[i]), o.shape
        assert o.dtype == jnp.float32
        assert bool(jnp.all(jnp.isfinite(o)))
        assert bool(jnp.all(o >= 0.0))

    print("KERNEL_OK")
</pallas_src>

<mosaic_0001>
module attributes {stable_mosaic.version = 11 : i64} {
  func.func @_lateral_kernel(%arg0: i32, %arg1: i32, %arg2: memref<1x16x128xf32, #tpu.memory_space<vmem>>, %arg3: memref<128x128xf32, #tpu.memory_space<vmem>>, %arg4: memref<1x128xf32, #tpu.memory_space<vmem>>, %arg5: memref<1x128xf32, #tpu.memory_space<vmem>>, %arg6: memref<1x16x128xf32, #tpu.memory_space<vmem>>) attributes {dimension_semantics = [#tpu.dimension_semantics<parallel>, #tpu.dimension_semantics<parallel>], iteration_bounds = array<i64: 2, 1>, scalar_prefetch = 0 : i64, scratch_operands = 0 : i64, tpu.core_type = #tpu.core_type<tc>, window_params = [{transform_indices = @transform_0, window_bounds = array<i64: 1, 16, 128>}, {pipeline_mode = #tpu.pipeline_mode<synchronous>, transform_indices = @transform_1, window_bounds = array<i64: 128, 128>}, {pipeline_mode = #tpu.pipeline_mode<synchronous>, transform_indices = @transform_2, window_bounds = array<i64: 1, 128>}, {pipeline_mode = #tpu.pipeline_mode<synchronous>, transform_indices = @transform_3, window_bounds = array<i64: 1, 128>}, {transform_indices = @transform_4, window_bounds = array<i64: 1, 16, 128>}]} {
    %c0 = arith.constant 0 : index
    %c0_0 = arith.constant 0 : index
    %c0_1 = arith.constant 0 : index
    %0 = vector.load %arg2[%c0, %c0_0, %c0_1] : memref<1x16x128xf32, #tpu.memory_space<vmem>>, vector<1x16x128xf32>
    %1 = vector.shape_cast %0 : vector<1x16x128xf32> to vector<16x128xf32>
    %c0_2 = arith.constant 0 : index
    %c0_3 = arith.constant 0 : index
    %2 = vector.load %arg3[%c0_2, %c0_3] : memref<128x128xf32, #tpu.memory_space<vmem>>, vector<128x128xf32>
    %cst = arith.constant dense<0.000000e+00> : vector<16x128xf32>
    %3 = tpu.matmul %1, %2, %cst {dimension_numbers = #tpu.dot_dimension_numbers<[1], [0], [0], [1], [0, 0, 1, 1], [], []>} : vector<16x128xf32>, vector<128x128xf32>, vector<16x128xf32> -> vector<16x128xf32>
    %c0_4 = arith.constant 0 : index
    %c0_5 = arith.constant 0 : index
    %4 = vector.load %arg4[%c0_4, %c0_5] : memref<1x128xf32, #tpu.memory_space<vmem>>, vector<1x128xf32>
    %5 = vector.broadcast %4 : vector<1x128xf32> to vector<16x128xf32>
    %6 = arith.mulf %3, %5 : vector<16x128xf32>
    %c0_6 = arith.constant 0 : index
    %c0_7 = arith.constant 0 : index
    %7 = vector.load %arg5[%c0_6, %c0_7] : memref<1x128xf32, #tpu.memory_space<vmem>>, vector<1x128xf32>
    %8 = vector.broadcast %7 : vector<1x128xf32> to vector<16x128xf32>
    %9 = arith.addf %6, %8 : vector<16x128xf32>
    %cst_8 = arith.constant 0.000000e+00 : f32
    %10 = vector.broadcast %cst_8 : f32 to vector<16x128xf32>
    %11 = arith.maximumf %9, %10 : vector<16x128xf32>
    %c0_9 = arith.constant 0 : index
    %c0_10 = arith.constant 0 : index
    %c0_11 = arith.constant 0 : index
    %12 = vector.load %arg6[%c0_9, %c0_10, %c0_11] : memref<1x16x128xf32, #tpu.memory_space<vmem>>, vector<1x16x128xf32>
    %13 = vector.shape_cast %12 : vector<1x16x128xf32> to vector<16x128xf32>
    %14 = vector.shape_cast %11 : vector<16x128xf32> to vector<1x16x128xf32>
    tpu.vector_store %arg6[%c0_9, %c0_10, %c0_11], %14 {strides = array<i32>} : memref<1x16x128xf32, #tpu.memory_space<vmem>>, vector<1x16x128xf32>,
    return
  }
  func.func @transform_0(%arg0: i32, %arg1: i32) -> (i32, i32, i32) {
    %c0_i32 = arith.constant 0 : i32
    %c0_i32_0 = arith.constant 0 : i32
    return %arg0, %arg1, %c0_i32 : i32, i32, i32
  }
  func.func @transform_1(%arg0: i32, %arg1: i32) -> (i32, i32) {
    %c0_i32 = arith.constant 0 : i32
    %c0_i32_0 = arith.constant 0 : i32
    %c0_i32_1 = arith.constant 0 : i32
    return %c0_i32, %c0_i32_0 : i32, i32
  }
  func.func @transform_2(%arg0: i32, %arg1: i32) -> (i32, i32) {
    %c0_i32 = arith.constant 0 : i32
    %c0_i32_0 = arith.constant 0 : i32
    %c0_i32_1 = arith.constant 0 : i32
    return %c0_i32, %c0_i32_0 : i32, i32
  }
  func.func @transform_3(%arg0: i32, %arg1: i32) -> (i32, i32) {
    %c0_i32 = arith.constant 0 : i32
    %c0_i32_0 = arith.constant 0 : i32
    %c0_i32_1 = arith.constant 0 : i32
    return %c0_i32, %c0_i32_0 : i32, i32
  }
  func.func @transform_4(%arg0: i32, %arg1: i32) -> (i32, i32, i32) {
    %c0_i32 = arith.constant 0 : i32
    %c0_i32_0 = arith.constant 0 : i32
    return %arg0, %arg1, %c0_i32 : i32, i32, i32
  }
}

</mosaic_0001>

<llo_original>
// kernel: tpu_custom_call.1
$region0: #{tpu_custom_call.1}
  #allocation0 [shape = 'u32[]', space=smem, size = 0x4, offset = 0x4, fixed_abs, tag = 'smem constant byte address 0x4 - core index']
  #allocation1 [shape = 'u32[144,128]{1,0:T(1,128)}', space=vmem, size = 0x12000, scoped, tag = 'internal scratch']
  %s0 = inlined_call_operand.hbm [shape: f32[2,16,128], index: 0, kind: input, shape index: {}]
  %s1 = inlined_call_operand.hbm [shape: f32[128,128], index: 1, kind: input, shape index: {}]
  %s2 = inlined_call_operand.vmem [shape: f32[1,128], index: 2, kind: input, shape index: {}]
  %s3 = inlined_call_operand.vmem [shape: f32[1,128], index: 3, kind: input, shape index: {}]
  %s4 = inlined_call_operand.hbm [shape: f32[2,16,128], index: 4, kind: output, shape index: {}]
  %s5 = sld [smem:[#allocation0]]
  $region57: #{tpu_custom_call.1} parent=0
    _
  %s7 = ssub.s32 1, %s5
  %s8 = scalar_select 0, %s7, %s5
  $region1: #{tpu_custom_call.1} parent=0
    #allocation2 [shape = 'u8[16384]{0}', space=vmem, size = 0x4000, scoped, tag = 'input window, operand 0']
    #allocation3 [shape = 's32[2]{0}', space=sflag, size = 0x8, scoped, tag = 'scoped memory for tpu_custom_call.1']
    #allocation4 [shape = 's32[2]{0}', space=sflag, size = 0x8, scoped, tag = 'scoped memory for tpu_custom_call.1']
    #allocation5 [shape = 'u8[65536]{0}', space=vmem, size = 0x10000, scoped, tag = 'input window, operand 1, single buffered']
    #allocation6 [shape = 's32[1]{0}', space=sflag, size = 0x4, scoped, tag = 'scoped memory for tpu_custom_call.1']
    #allocation7 [shape = 'u8[16384]{0}', space=vmem, size = 0x4000, scoped, tag = 'output window, operand 0']
    %9 = vsyncpa [#allocation3], 0
    %s10 = scalar_lea.sflag [#allocation3], 1
    %11 = vsyncpa %s10, 0
    %12 = vsyncpa [#allocation6], 0
    %13 = vsyncpa [#allocation4], 0
    %s14 = scalar_lea.sflag [#allocation4], 1
    %15 = vsyncpa %s14, 0
    loop: start=0, step=1, limit=4
    $region2: #{tpu_custom_call.1} parent=1 // loop_pre_header
      _
    $region3: #{tpu_custom_call.1} parent=1 // loop_header
      %s17 = sphi 0, %s21
      %p18 = scmp.ge.s32.totalorder %s17, 4
      %s24 = sphi 0, %s36
      %s25 = sphi 0, %s32
      %s26 = sphi 0, %s24
      %s27 = sphi 0, %s25
      %s28 = sphi 0, %s26
      %s29 = sphi 0, %s27
      %s41 = sphi 0, %s43
      %s44 = sphi 0, %s41
      %s45 = sphi 0, %s44
      %s61 = sphi 0, %s45
      %s65 = sphi 0, %s65
      %s67 = sphi 0, %s65
      %s68 = sphi 0, %s67
      %s82 = sphi 0, %s68
      %s86 = sphi 0, %s86
      %s88 = sphi 0, %s86
      %s89 = sphi 0, %s88
      %s103 = sphi 0, %s89
      %s107 = sphi 0, %s107
      %s109 = sphi 0, %s107
      %s110 = sphi 0, %s109
      %s124 = sphi 0, %s110
      %s132 = sphi 0, %s134
      %s135 = sphi 0, %s132
      %s136 = sphi 0, %s135
      %s152 = sphi 0, %s136
    $region4: #{tpu_custom_call.1} parent=1 // loop_header_branch
      %20 = sbr.rel (%p18) target = $region8
    $region5: #{tpu_custom_call.1} parent=1 // loop_body
      %s22 = ssub.s32 %s17, 1
      %s23 = ssub.s32 %s17, 2
      %s30 = sadd.s32 1, %s25
      %p31 = scmp.ge.s32.totalorder %s30, 1
      %s32 = scalar_select %p31, 0, %s30
      %s33 = sadd.s32 1, %s24
      %s34 = scalar_select %p31, %s33, %s24
      %p35 = scmp.ge.s32.totalorder %s34, 2
      %s36 = scalar_select %p35, 0, %s34
      %s37 = ssub.s32 %s24, %s36
      %s38 = ssub.s32 %s25, %s32
      %s39 = sor.u32 %s37, %s38
      %p40 = scmp.eq.s32.totalorder %s39, 0
      %s42 = sadd.s32 %s41, 1
      %s43 = scalar_select %p40, %s41, %s42
      %p46 = pneg %p40
      %p47 = scmp.eq.s32.totalorder %s17, 1
      %p48 = por %p46, %p47
      %p49 = scmp.ne.s32.totalorder %s41, %s44
      %p50 = scmp.eq.s32.totalorder %s17, 0
      %p51 = por %p49, %p50
      %p52 = scmp.ne.s32.totalorder %s41, %s44
      %p53 = scmp.eq.s32.totalorder %s22, 1
      %p54 = por %p52, %p53
      %p55 = scmp.ne.s32.totalorder %s44, %s45
      %p56 = scmp.eq.s32.totalorder %s22, 0
      %p57 = por %p55, %p56
      %p58 = scmp.ne.s32.totalorder %s44, %s45
      %p59 = scmp.eq.s32.totalorder %s23, 1
      %p60 = por %p58, %p59
      %p62 = scmp.ne.s32.totalorder %s45, %s61
      %p63 = scmp.eq.s32.totalorder %s23, 0
      %p64 = por %p62, %p63
      %s66 = sadd.s32 %s65, 1
      %p69 = scmp.eq.s32.totalorder %s17, 1
      %p70 = scmp.ne.s32.totalorder %s65, %s67
      %p71 = scmp.eq.s32.totalorder %s17, 0
      %p72 = por %p70, %p71
      %p73 = scmp.ne.s32.totalorder %s65, %s67
      %p74 = scmp.eq.s32.totalorder %s22, 1
      %p75 = por %p73, %p74
      %p76 = scmp.ne.s32.totalorder %s67, %s68
      %p77 = scmp.eq.s32.totalorder %s22, 0
      %p78 = por %p76, %p77
      %p79 = scmp.ne.s32.totalorder %s67, %s68
      %p80 = scmp.eq.s32.totalorder %s23, 1
      %p81 = por %p79, %p80
      %p83 = scmp.ne.s32.totalorder %s68, %s82
      %p84 = scmp.eq.s32.totalorder %s23, 0
      %p85 = por %p83, %p84
      %s87 = sadd.s32 %s86, 1
      %p90 = scmp.eq.s32.totalorder %s17, 1
      %p91 = scmp.ne.s32.totalorder %s86, %s88
      %p92 = scmp.eq.s32.totalorder %s17, 0
      %p93 = por %p91, %p92
      %p94 = scmp.ne.s32.totalorder %s86, %s88
      %p95 = scmp.eq.s32.totalorder %s22, 1
      %p96 = por %p94, %p95
      %p97 = scmp.ne.s32.totalorder %s88, %s89
      %p98 = scmp.eq.s32.totalorder %s22, 0
      %p99 = por %p97, %p98
      %p100 = scmp.ne.s32.totalorder %s88, %s89
      %p101 = scmp.eq.s32.totalorder %s23, 1
      %p102 = por %p100, %p101
      %p104 = scmp.ne.s32.totalorder %s89, %s103
      %p105 = scmp.eq.s32.totalorder %s23, 0
      %p106 = por %p104, %p105
      %s108 = sadd.s32 %s107, 1
      %p111 = scmp.eq.s32.totalorder %s17, 1
      %p112 = scmp.ne.s32.totalorder %s107, %s109
      %p113 = scmp.eq.s32.totalorder %s17, 0
      %p114 = por %p112, %p113
      %p115 = scmp.ne.s32.totalorder %s107, %s109
      %p116 = scmp.eq.s32.totalorder %s22, 1
      %p117 = por %p115, %p116
      %p118 = scmp.ne.s32.totalorder %s109, %s110
      %p119 = scmp.eq.s32.totalorder %s22, 0
      %p120 = por %p118, %p119
      %p121 = scmp.ne.s32.totalorder %s109, %s110
      %p122 = scmp.eq.s32.totalorder %s23, 1
      %p123 = por %p121, %p122
      %p125 = scmp.ne.s32.totalorder %s110, %s124
      %p126 = scmp.eq.s32.totalorder %s23, 0
      %p127 = por %p125, %p126
      %s128 = ssub.s32 %s24, %s36
      %s129 = ssub.s32 %s25, %s32
      %s130 = sor.u32 %s128, %s129
      %p131 = scmp.eq.s32.totalorder %s130, 0
      %s133 = sadd.s32 %s132, 1
      %s134 = scalar_select %p131, %s132, %s133
      %p137 = pneg %p131
      %p138 = scmp.eq.s32.totalorder %s17, 1
      %p139 = por %p137, %p138
      %p140 = scmp.ne.s32.totalorder %s132, %s135
      %p141 = scmp.eq.s32.totalorder %s17, 0
      %p142 = por %p140, %p141
      %p143 = scmp.ne.s32.totalorder %s132, %s135
      %p144 = scmp.eq.s32.totalorder %s22, 1
      %p145 = por %p143, %p144
      %p146 = scmp.ne.s32.totalorder %s135, %s136
      %p147 = scmp.eq.s32.totalorder %s22, 0
      %p148 = por %p146, %p147
      %p149 = scmp.ne.s32.totalorder %s135, %s136
      %p150 = scmp.eq.s32.totalorder %s23, 1
      %p151 = por %p149, %p150
      %p153 = scmp.ne.s32.totalorder %s136, %s152
      %p154 = scmp.eq.s32.totalorder %s23, 0
      %p155 = por %p153, %p154
      %p156 = scmp.le.s32.totalorder 1, %s17
      %p157 = scmp.lt.s32.totalorder %s17, 3
      %p158 = pnand %p156, %p157
      %p159 = pneg %p158
      // Predicated region
      $region9: #{tpu_custom_call.1} parent=5 // pred_check
        _
      $region10: #{tpu_custom_call.1} parent=5 // pred_check_branch
        %161 = sbr.rel (%p158) target = $region12
      $region11: #{tpu_custom_call.1} parent=5 // pred_region
        %s162 = ssub.s32 %s17, 1
        // Predicated region
        $region13: #{tpu_custom_call.1} parent=11 // pred_check
          %p163 = pneg %p78
        $region14: #{tpu_custom_call.1} parent=11 // pred_check_branch
          %165 = sbr.rel (%p163) target = $region16
        $region15: #{tpu_custom_call.1} parent=11 // pred_region
          %s167 = ssub.s32 2048, 2048
          %168 = vsyncadd [#allocation6], %s167
          %s169 = sshll.u32 [#allocation5], 4
          %s170 = int_to_ptr.vmem [resolvable:$true] %s169
          %175 = dma.hbm_to_vmem [thread:$0]  %s1, 2048, %s170, [#allocation6], 128, 128, 8
        $region16: #{tpu_custom_call.1} parent=11 // pred_fallthru
          _
        // Predicated region
        $region17: #{tpu_custom_call.1} parent=11 // pred_check
          %p176 = pneg %p99
        $region18: #{tpu_custom_call.1} parent=11 // pred_check_branch
          %178 = sbr.rel (%p176) target = $region20
        $region19: #{tpu_custom_call.1} parent=11 // pred_region
          _
        $region20: #{tpu_custom_call.1} parent=11 // pred_fallthru
          _
        // Predicated region
        $region21: #{tpu_custom_call.1} parent=11 // pred_check
          %p179 = pneg %p120
        $region22: #{tpu_custom_call.1} parent=11 // pred_check_branch
          %181 = sbr.rel (%p179) target = $region24
        $region23: #{tpu_custom_call.1} parent=11 // pred_region
          _
        $region24: #{tpu_custom_call.1} parent=11 // pred_fallthru
          _
      $region12: #{tpu_custom_call.1} parent=5 // pred_fallthru
        _
      %p182 = scmp.lt.s32.totalorder %s17, 2
      // Predicated region
      $region25: #{tpu_custom_call.1} parent=5 // pred_check
        %p183 = pneg %p182
      $region26: #{tpu_custom_call.1} parent=5 // pred_check_branch
        %185 = sbr.rel (%p183) target = $region28
      $region27: #{tpu_custom_call.1} parent=5 // pred_region
        // Predicated region
        $region29: #{tpu_custom_call.1} parent=27 // pred_check
          %p186 = pneg %p51
        $region30: #{tpu_custom_call.1} parent=27 // pred_check_branch
          %188 = sbr.rel (%p186) target = $region32
        $region31: #{tpu_custom_call.1} parent=27 // pred_region
          %s189 = sand.u32 %s41, 1
          %s190 = scalar_lea.sflag [#allocation3], %s189
          %s191 = sand.u32 %s41, 1
          %s192 = smul.addr %s191, 16
          %s193 = scalar_lea.vmem [#allocation2], %s192
          %s194 = smul.u32 2, %s25
          %s196 = ssub.s32 256, 256
          %197 = vsyncadd %s190, %s196
          %s198 = smul.addr %s24, 2
          %s199 = sadd.s32 %s194, %s198
          %s200 = smul.addr %s199, 128
          %s201 = scalar_lea.hbm %s0, %s200
          %s202 = sshll.u32 %s193, 4
          %s203 = int_to_ptr.vmem [resolvable:$true] %s202
          %208 = dma.hbm_to_vmem [thread:$0]  %s201, 256, %s203, %s190, 128, 128, 8
        $region32: #{tpu_custom_call.1} parent=27 // pred_fallthru
          _
      $region28: #{tpu_custom_call.1} parent=5 // pred_fallthru
        _
      %p209 = scmp.le.s32.totalorder 1, %s17
      %p210 = scmp.lt.s32.totalorder %s17, 3
      %p211 = pnand %p209, %p210
      %p212 = pneg %p211
      // Predicated region
      $region33: #{tpu_custom_call.1} parent=5 // pred_check
        _
      $region34: #{tpu_custom_call.1} parent=5 // pred_check_branch
        %214 = sbr.rel (%p211) target = $region36
      $region35: #{tpu_custom_call.1} parent=5 // pred_region
        %s215 = ssub.s32 %s17, 1
        %s216 = sand.u32 %s44, 1
        %s217 = scalar_lea.sflag [#allocation3], %s216
        %s218 = sand.u32 %s44, 1
        %s219 = smul.addr %s218, 16
        %s220 = scalar_lea.vmem [#allocation2], %s219
        // Predicated region
        $region37: #{tpu_custom_call.1} parent=35 // pred_check
          %p221 = pneg %p57
        $region38: #{tpu_custom_call.1} parent=35 // pred_check_branch
          %223 = sbr.rel (%p221) target = $region40
        $region39: #{tpu_custom_call.1} parent=35 // pred_region
          %224 = dma.done %s217, 256
        $region40: #{tpu_custom_call.1} parent=35 // pred_fallthru
          _
        // Predicated region
        $region41: #{tpu_custom_call.1} parent=35 // pred_check
          %p225 = pneg %p78
        $region42: #{tpu_custom_call.1} parent=35 // pred_check_branch
          %227 = sbr.rel (%p225) target = $region44
        $region43: #{tpu_custom_call.1} parent=35 // pred_region
          %228 = dma.done [#allocation6], 2048
        $region44: #{tpu_custom_call.1} parent=35 // pred_fallthru
          _
        %s229 = sand.u32 %s44, 1
        %s230 = scalar_lea.sflag [#allocation3], %s229
        %s231 = sand.u32 %s44, 1
        %s232 = smul.addr %s231, 16
        %s233 = scalar_lea.vmem [#allocation2], %s232
        %p234 = pneg %p57
        %p235 = pneg %p54
        %p236 = pneg %p78
        %p237 = pneg %p75
        %p238 = pneg %p99
        %p239 = pneg %p96
        %p240 = pneg %p120
        %p241 = pneg %p117
        %p242 = pneg %p148
        %p243 = pneg %p145
        %s244 = sand.u32 %s135, 1
        %s245 = scalar_lea.sflag [#allocation4], %s244
        %s246 = sand.u32 %s135, 1
        %s247 = smul.addr %s246, 16
        %s248 = scalar_lea.vmem [#allocation7], %s247
        %s249 = smul.u32 2, %s27
        %s250 = smul.u32 2, %s27
        %v251 = vld [vmem:[%s220] sm:$0xff]
        %v252 = vld [vmem:[%s220 + $0x8] sm:$0xff]
        %v253 = vld [vmem:[#allocation5] sm:$0xff]
        %v254 = vld [vmem:[#allocation5 + $0x8] sm:$0xff]
        %v255 = vld [vmem:[#allocation5 + $0x10] sm:$0xff]
        %v256 = vld [vmem:[#allocation5 + $0x18] sm:$0xff]
        %v257 = vld [vmem:[#allocation5 + $0x20] sm:$0xff]
        %v258 = vld [vmem:[#allocation5 + $0x28] sm:$0xff]
        %v259 = vld [vmem:[#allocation5 + $0x30] sm:$0xff]
        %v260 = vld [vmem:[#allocation5 + $0x38] sm:$0xff]
        %v261 = vld [vmem:[#allocation5 + $0x40] sm:$0xff]
        %v262 = vld [vmem:[#allocation5 + $0x48] sm:$0xff]
        %v263 = vld [vmem:[#allocation5 + $0x50] sm:$0xff]
        %v264 = vld [vmem:[#allocation5 + $0x58] sm:$0xff]
        %v265 = vld [vmem:[#allocation5 + $0x60] sm:$0xff]
        %v266 = vld [vmem:[#allocation5 + $0x68] sm:$0xff]
        %v267 = vld [vmem:[#allocation5 + $0x70] sm:$0xff]
        %v268 = vld [vmem:[#allocation5 + $0x78] sm:$0xff]
        %269 = vmatprep.subr.mxu0 0.0
        %270 = vmatpush1.msra.mxu0 %v268
        %271 = vmatprep.subr.mxu0 0.0
        %272 = vmatpush1.msra.mxu0 %v267
        %273 = vmatprep.subr.mxu0 0.0
        %274 = vmatpush1.msra.mxu0 %v266
        %275 = vmatprep.subr.mxu0 0.0
        %276 = vmatpush1.msra.mxu0 %v265
        %277 = vmatprep.subr.mxu0 0.0
        %278 = vmatpush1.msra.mxu0 %v264
        %279 = vmatprep.subr.mxu0 0.0
        %280 = vmatpush1.msra.mxu0 %v263
        %281 = vmatprep.subr.mxu0 0.0
        %282 = vmatpush1.msra.mxu0 %v262
        %283 = vmatprep.subr.mxu0 0.0
        %284 = vmatpush1.msra.mxu0 %v261
        %285 = vmatprep.subr.mxu0 0.0
        %286 = vmatpush1.msra.mxu0 %v260
        %287 = vmatprep.subr.mxu0 0.0
        %288 = vmatpush1.msra.mxu0 %v259
        %289 = vmatprep.subr.mxu0 0.0
        %290 = vmatpush1.msra.mxu0 %v258
        %291 = vmatprep.subr.mxu0 0.0
        %292 = vmatpush1.msra.mxu0 %v257
        %293 = vmatprep.subr.mxu0 0.0
        %294 = vmatpush1.msra.mxu0 %v256
        %295 = vmatprep.subr.mxu0 0.0
        %296 = vmatpush1.msra.mxu0 %v255
        %297 = vmatprep.subr.mxu0 0.0
        %298 = vmatpush1.msra.mxu0 %v254
        %299 = vmatprep.subr.mxu0 0.0
        %300 = vmatpush1.msra.mxu0 %v253
        %301 = vmatprep.subr.mxu0 0.0
        %302 = vmatpush2.msra.mxu0 0.0
        %303 = vmatprep.subr.mxu0 0.0
        %304 = vmatpush2.msra.mxu0 0.0
        %305 = vmatprep.subr.mxu0 0.0
        %306 = vmatpush2.msra.mxu0 0.0
        %307 = vmatprep.subr.mxu0 0.0
        %308 = vmatpush2.msra.mxu0 0.0
        %309 = vmatprep.subr.mxu0 0.0
        %310 = vmatpush2.msra.mxu0 0.0
        %311 = vmatprep.subr.mxu0 0.0
        %312 = vmatpush2.msra.mxu0 0.0
        %313 = vmatprep.subr.mxu0 0.0
        %314 = vmatpush2.msra.mxu0 0.0
        %315 = vmatprep.subr.mxu0 0.0
        %316 = vmatpush2.msra.mxu0 0.0
        %317 = vmatprep.subr.mxu0 0.0
        %318 = vmatpush2.msra.mxu0 0.0
        %319 = vmatprep.subr.mxu0 0.0
        %320 = vmatpush2.msra.mxu0 0.0
        %321 = vmatprep.subr.mxu0 0.0
        %322 = vmatpush2.msra.mxu0 0.0
        %323 = vmatprep.subr.mxu0 0.0
        %324 = vmatpush2.msra.mxu0 0.0
        %325 = vmatprep.subr.mxu0 0.0
        %326 = vmatpush2.msra.mxu0 0.0
        %327 = vmatprep.subr.mxu0 0.0
        %328 = vmatpush2.msra.mxu0 0.0
        %329 = vmatprep.subr.mxu0 0.0
        %330 = vmatpush2.msra.mxu0 0.0
        %331 = vmatprep.subr.mxu0 0.0
        %332 = vmatpush2.msra.mxu0 0.0
        %333 = vmatprep.mubr.f32.mxu0 0.0
        %334 = vmatmul.mubr.f32.gmra.mxu0 %v251
        %v335 = vpop.f32.mrf.mxu0
        %v336 = vadd.f32 0.0, %v335
        %v337 = vpop.f32.mrf.mxu0
        %338 = vmatprep.mubr.f32.mxu0 0.0
        %339 = vmatmul.mubr.f32.gmra.mxu0 %v252
        %v340 = vpop.f32.mrf.mxu0
        %v341 = vadd.f32 0.0, %v340
        %v342 = vpop.f32.mrf.mxu0
        %343 = vdwg.mxu0
        %v344 = vld [vmem:[%s2] sm:$0x1]
        %v346 = vlaneseq
        %v347 = vshrl.u32 %v346, 7
        %v348 = vsub.s32 0, %v347
        %v349 = vrot.slane %v344, %v348
        %v351 = vmul.f32 %v336, %v349
        %v352 = vmul.f32 %v341, %v349
        %v353 = vld [vmem:[%s3] sm:$0x1]
        %v355 = vlaneseq
        %v356 = vshrl.u32 %v355, 7
        %v357 = vsub.s32 0, %v356
        %v358 = vrot.slane %v353, %v357
        %v360 = vadd.f32 %v351, %v358
        %v361 = vadd.f32 %v352, %v358
        %v362 = vmax.f32 %v360, 0.0
        %v363 = vmax.f32 %v361, 0.0
        %364 = vst [vmem:[%s248] sm:$0xff] %v362
        %365 = vst [vmem:[%s248 + $0x8] sm:$0xff] %v363
        %s366 = sand.u32 %s135, 1
        %s367 = scalar_lea.sflag [#allocation4], %s366
        %s368 = sand.u32 %s135, 1
        %s369 = smul.addr %s368, 16
        %s370 = scalar_lea.vmem [#allocation7], %s369
        // Predicated region
        $region45: #{tpu_custom_call.1} parent=35 // pred_check
          %p371 = pneg %p145
        $region46: #{tpu_custom_call.1} parent=35 // pred_check_branch
          %373 = sbr.rel (%p371) target = $region48
        $region47: #{tpu_custom_call.1} parent=35 // pred_region
          %s374 = smul.u32 2, %s27
          %s376 = ssub.s32 256, 256
          %377 = vsyncadd %s367, %s376
          %s378 = smul.addr %s26, 2
          %s379 = sadd.s32 %s374, %s378
          %s380 = smul.addr %s379, 128
          %s381 = scalar_lea.hbm %s4, %s380
          %s382 = sshll.u32 %s370, 4
          %s383 = int_to_ptr.vmem [resolvable:$true] %s382
          %388 = dma.vmem_to_hbm [thread:$0]  %s383, 256, %s381, %s367, 128, 128, 8
        $region48: #{tpu_custom_call.1} parent=35 // pred_fallthru
          _
      $region36: #{tpu_custom_call.1} parent=5 // pred_fallthru
        _
      %p389 = scmp.le.s32.totalorder 2, %s17
      // Predicated region
      $region49: #{tpu_custom_call.1} parent=5 // pred_check
        %p390 = pneg %p389
      $region50: #{tpu_custom_call.1} parent=5 // pred_check_branch
        %392 = sbr.rel (%p390) target = $region52
      $region51: #{tpu_custom_call.1} parent=5 // pred_region
        %s393 = ssub.s32 %s17, 2
        // Predicated region
        $region53: #{tpu_custom_call.1} parent=51 // pred_check
          %p394 = pneg %p151
        $region54: #{tpu_custom_call.1} parent=51 // pred_check_branch
          %396 = sbr.rel (%p394) target = $region56
        $region55: #{tpu_custom_call.1} parent=51 // pred_region
          %s397 = sand.u32 %s136, 1
          %s398 = scalar_lea.sflag [#allocation4], %s397
          %s399 = sand.u32 %s136, 1
          %s400 = smul.addr %s399, 16
          %s401 = scalar_lea.vmem [#allocation7], %s400
          %402 = dma.done %s398, 256
        $region56: #{tpu_custom_call.1} parent=51 // pred_fallthru
          _
      $region52: #{tpu_custom_call.1} parent=5 // pred_fallthru
        _
    $region6: #{tpu_custom_call.1} parent=1 // loop_footer
      %s21 = sadd.s32 1, %s17
    $region7: #{tpu_custom_call.1} parent=1 // loop_footer_branch
      %16 = sbr.rel target = $region3
    $region8: #{tpu_custom_call.1} parent=1 // loop_exit
      _
    %403 = vsyncpa [#allocation3], 1
    %s404 = scalar_lea.sflag [#allocation3], 1
    %405 = vsyncpa %s404, 1
    %406 = vsyncpa [#allocation6], 1
    %407 = vsyncpa [#allocation4], 1
    %s408 = scalar_lea.sflag [#allocation4], 1
    %409 = vsyncpa %s408, 1

</llo_original>
